<compile_context>
chip_gen: v7x
topology: tpu7x:2x2x1
jax: 0.10.0
libtpu: 0.0.40
codegen_flags: <defaults>
</compile_context>

<pallas_src>
import math
from functools import partial

import jax
import jax.numpy as jnp
import numpy as np
from jax.experimental import pallas as pl
from jax.experimental.pallas import tpu as pltpu


def _round_up(x: int, m: int) -> int:
    return ((x + m - 1) // m) * m


# ----------------------------- parameter setup ------------------------------

def make_combined_basis(n_fft: int, win_length: int, hop: int, n_chunks: int,
                        n_freq_pad: int, dtype) -> jnp.ndarray:
    """Window-weighted DFT basis, chunked along n_fft.

    Returns (n_chunks, hop, 2*n_freq_pad):
      columns [0, n_freq)                : cos basis
      columns [n_freq_pad, n_freq_pad+n_freq) : -sin basis
    Rows >= n_fft (last partial chunk) and padded columns are zero.
    Built in float64 on the host, cast once to the compute dtype.
    """
    n_freq = n_fft // 2 + 1
    n = np.arange(win_length, dtype=np.float64)
    if win_length > 1:
        win = 0.5 - 0.5 * np.cos(2.0 * np.pi * n / (win_length - 1))  # periodic=False
    else:
        win = np.ones((1,), dtype=np.float64)
    # torch.stft centers the window inside the n_fft frame (zero pad both sides).
    w_full = np.zeros((n_fft,), dtype=np.float64)
    left = (n_fft - win_length) // 2
    w_full[left:left + win_length] = win

    k = np.arange(n_fft, dtype=np.float64)[:, None]
    f = np.arange(n_freq, dtype=np.float64)[None, :]
    ang = 2.0 * np.pi * k * f / float(n_fft)
    cos_b = np.cos(ang) * w_full[:, None]
    sin_b = -np.sin(ang) * w_full[:, None]

    F = n_freq_pad
    basis = np.zeros((n_chunks * hop, 2 * F), dtype=np.float64)
    basis[:n_fft, :n_freq] = cos_b
    basis[:n_fft, F:F + n_freq] = sin_b
    basis = basis.reshape(n_chunks, hop, 2 * F).astype(np.float32)
    return jnp.asarray(basis, dtype=dtype)


# ----------------------------- Pallas kernel --------------------------------

def _power_spectrum_kernel(x_ref, halo_ref, basis_ref, out_ref, *,
                           tf, n_freq_pad, n_chunks, compute_dtype):
    # x_ref:    (1, TF,   hop)   signal chunks for frames [ft*TF, (ft+1)*TF)
    # halo_ref: (1, HALO, hop)   next HALO chunks (frame overlap into next tile)
    # basis_ref:(n_chunks, hop, 2F)  window-weighted DFT basis split along n_fft
    # out_ref:  (1, F, TF)       power spectrum, frequency-major (torch layout)
    #
    # Upcast to f32 for the (cheap) unaligned sublane shifts, feed the MXU in
    # the compute dtype (bf16) with f32 accumulation.
    slab = jnp.concatenate(
        [x_ref[0].astype(jnp.float32), halo_ref[0].astype(jnp.float32)], axis=0)

    acc = None
    for c in range(n_chunks):
        chunk = slab[c:c + tf, :].astype(compute_dtype)          # (TF, hop)
        part = jnp.dot(chunk, basis_ref[c],
                       preferred_element_type=jnp.float32)       # (TF, 2F)
        acc = part if acc is None else acc + part

    re = acc[:, :n_freq_pad]
    im = acc[:, n_freq_pad:]
    power = re * re + im * im                                    # (TF, F) f32
    out_ref[0] = jnp.transpose(power, (1, 0))                    # (F, TF) lane-dense


def power_spectrum_pallas(x_chunks, basis, *, tf, halo, n_tiles, n_freq_pad,
                          n_chunks, hop, compute_dtype):
    B = x_chunks.shape[0]
    n_frames_pad = n_tiles * tf
    two_f = 2 * n_freq_pad
    kernel = partial(_power_spectrum_kernel, tf=tf, n_freq_pad=n_freq_pad,
                     n_chunks=n_chunks, compute_dtype=compute_dtype)
    return pl.pallas_call(
        kernel,
        out_shape=jax.ShapeDtypeStruct((B, n_freq_pad, n_frames_pad), jnp.float32),
        grid_spec=pltpu.PrefetchScalarGridSpec(
            num_scalar_prefetch=0,
            grid=(B, n_tiles),
            in_specs=[
                # main TF chunk rows of this frame tile
                pl.BlockSpec((1, tf, hop), lambda b, t: (b, t, 0)),
                # halo rows (start of the next tile), same array passed again
                pl.BlockSpec((1, halo, hop),
                             lambda b, t: (b, (t + 1) * (tf // halo), 0)),
                # constant combined cos|sin basis (block index never changes)
                pl.BlockSpec((n_chunks, hop, two_f), lambda b, t: (0, 0, 0)),
            ],
            out_specs=pl.BlockSpec((1, n_freq_pad, tf), lambda b, t: (b, 0, t)),
        ),
        compiler_params=pltpu.CompilerParams(
            dimension_semantics=("parallel", "parallel")),
    )(x_chunks, x_chunks, basis)


# ------------------------------ module wrapper -------------------------------

class PowerSpectrum:
    def __init__(self, n_window_size: int = 320, n_window_stride: int = 160,
                 n_fft=None, frame_tile: int = 512, compute_dtype=jnp.bfloat16):
        if n_window_size <= 0 or n_window_stride <= 0:
            raise ValueError("n_window_size and n_window_stride must be positive")
        self.win_length = n_window_size
        self.hop_length = n_window_stride
        self.n_fft = n_fft or 2 ** math.ceil(math.log2(self.win_length))
        self.n_freq = self.n_fft // 2 + 1
        self.n_freq_pad = _round_up(self.n_freq, 128)          # lane-dense freq dim
        self.n_chunks = -(-self.n_fft // self.hop_length)      # ceil(n_fft / hop)
        self.halo = max(8, _round_up(max(self.n_chunks - 1, 1), 8))
        self.frame_tile = frame_tile                           # frames per grid step
        self.compute_dtype = compute_dtype
        self.basis = make_combined_basis(self.n_fft, self.win_length,
                                         self.hop_length, self.n_chunks,
                                         self.n_freq_pad, compute_dtype)

    def get_sequence_length(self, lengths: jnp.ndarray) -> jnp.ndarray:
        # TODO(synk): torch returns int64 (long); JAX default config gives int32.
        return (jnp.floor(lengths / self.hop_length) + 1).astype(jnp.int32)

    def _tile_sizes(self, n_frames: int):
        halo = self.halo
        tf_single = _round_up(n_frames, halo)
        if tf_single <= max(self.frame_tile, halo):
            tf = tf_single                      # single tile: block == full frame dim
        else:
            tf = _round_up(self.frame_tile, math.lcm(halo, 128))
        n_frames_pad = _round_up(n_frames, tf)
        n_tiles = n_frames_pad // tf
        assert tf % halo == 0 and (n_tiles == 1 or tf % 128 == 0)
        return tf, n_frames_pad, n_tiles

    def __call__(self, x: jnp.ndarray, lengths: jnp.ndarray):
        # x: (batch, time) float32
        B, T = x.shape
        hop = self.hop_length
        n_frames = 1 + T // hop
        tf, n_frames_pad, n_tiles = self._tile_sizes(n_frames)

        # center=True reflect padding (torch.stft), then zero-pad so the signal
        # is an integer number of hop-sized chunks covering every tile + halo.
        pad = self.n_fft // 2
        xp = jnp.pad(x, ((0, 0), (pad, pad)), mode="reflect")
        n_rows = max(n_frames_pad + self.halo, -(-xp.shape[1] // hop))
        xp = jnp.pad(xp, ((0, 0), (0, n_rows * hop - xp.shape[1])))
        x_chunks = xp.reshape(B, n_rows, hop).astype(self.compute_dtype)

        power = power_spectrum_pallas(
            x_chunks, self.basis, tf=tf, halo=self.halo, n_tiles=n_tiles,
            n_freq_pad=self.n_freq_pad, n_chunks=self.n_chunks, hop=hop,
            compute_dtype=self.compute_dtype)
        # Crop the alignment padding; output is already (B, n_freq, n_frames) major.
        power = power[:, :self.n_freq, :n_frames]
        return power, self.get_sequence_length(lengths)


# --------------------------------- main --------------------------------------

if __name__ == "__main__":
    key = jax.random.PRNGKey(0)
    B, T = 2, 64
    # Small, shape-compatible config: win=16, hop=8 -> n_fft=16, n_freq=9, n_frames=9
    ps = PowerSpectrum(n_window_size=16, n_window_stride=8)

    x = jax.random.normal(key, (B, T), dtype=jnp.float32)
    lengths = jnp.array([64.0, 48.0], dtype=jnp.float32)

    power, seq_len = ps(x, lengths)
    power, seq_len = jax.block_until_ready((power, seq_len))

    n_freq = ps.n_fft // 2 + 1
    n_frames = 1 + T // ps.hop_length
    assert power.shape == (B, n_freq, n_frames), power.shape
    assert seq_len.shape == (B,) and seq_len.dtype == jnp.int32

    # ------------------------- references -----------------------------------
    pad = ps.n_fft // 2
    xp = jnp.pad(x, ((0, 0), (pad, pad)), mode="reflect")
    starts = jnp.arange(n_frames) * ps.hop_length
    idx = starts[:, None] + jnp.arange(ps.n_fft)[None, :]
    frames = xp[:, idx]                                      # (B, n_frames, n_fft) f32

    # Full-precision (float32) reference of the exact torch math.
    nn_ = np.arange(ps.n_fft, dtype=np.float64)[:, None]
    ff_ = np.arange(n_freq, dtype=np.float64)[None, :]
    w = 0.5 - 0.5 * np.cos(2 * np.pi * np.arange(ps.win_length, dtype=np.float64)
                           / (ps.win_length - 1))
    w_full = np.zeros(ps.n_fft, dtype=np.float64)
    left = (ps.n_fft - ps.win_length) // 2
    w_full[left:left + ps.win_length] = w
    ang = 2 * np.pi * nn_ * ff_ / ps.n_fft
    cos_b = jnp.asarray((np.cos(ang) * w_full[:, None]).astype(np.float32))
    sin_b = jnp.asarray((-np.sin(ang) * w_full[:, None]).astype(np.float32))
    hi = jax.lax.Precision.HIGHEST
    re = jnp.einsum("btn,nf->btf", frames, cos_b, precision=hi)
    im = jnp.einsum("btn,nf->btf", frames, sin_b, precision=hi)
    ref_f32 = jnp.transpose(re ** 2 + im ** 2, (0, 2, 1))

    # Same-quantization (bf16-operand, f32-accumulate) reference: isolates the
    # kernel's correctness from the deliberate bf16 precision trade-off.
    F = ps.n_freq_pad
    basis_flat = ps.basis.astype(jnp.float32).reshape(
        ps.n_chunks * ps.hop_length, 2 * F)[:ps.n_fft]
    frames_q = frames.astype(ps.compute_dtype).astype(jnp.float32)
    proj = jnp.einsum("btn,nf->btf", frames_q, basis_flat, precision=hi)
    ref_q = jnp.transpose(proj[..., :n_freq] ** 2 + proj[..., F:F + n_freq] ** 2,
                          (0, 2, 1))

    np.testing.assert_allclose(np.asarray(power), np.asarray(ref_q),
                               rtol=2e-3, atol=2e-3)
    np.testing.assert_allclose(np.asarray(power), np.asarray(ref_f32),
                               rtol=5e-2, atol=5e-2)
    assert np.array_equal(np.asarray(seq_len), np.array([9, 7], dtype=np.int32))

    print("KERNEL_OK")
</pallas_src>

<mosaic_0001>
module attributes {stable_mosaic.version = 11 : i64} {
  func.func @_power_spectrum_kernel(%arg0: i32, %arg1: i32, %arg2: memref<1x16x8xbf16, #tpu.memory_space<vmem>>, %arg3: memref<1x8x8xbf16, #tpu.memory_space<vmem>>, %arg4: memref<2x8x256xbf16, #tpu.memory_space<vmem>>, %arg5: memref<1x128x16xf32, #tpu.memory_space<vmem>>) attributes {dimension_semantics = [#tpu.dimension_semantics<parallel>, #tpu.dimension_semantics<parallel>], iteration_bounds = array<i64: 2, 1>, scalar_prefetch = 0 : i64, scratch_operands = 0 : i64, tpu.core_type = #tpu.core_type<tc>, window_params = [{transform_indices = @transform_0, window_bounds = array<i64: 1, 16, 8>}, {transform_indices = @transform_1, window_bounds = array<i64: 1, 8, 8>}, {pipeline_mode = #tpu.pipeline_mode<synchronous>, transform_indices = @transform_2, window_bounds = array<i64: 2, 8, 256>}, {transform_indices = @transform_3, window_bounds = array<i64: 1, 128, 16>}]} {
    %c0 = arith.constant 0 : index
    %c0_0 = arith.constant 0 : index
    %c0_1 = arith.constant 0 : index
    %0 = vector.load %arg2[%c0, %c0_0, %c0_1] : memref<1x16x8xbf16, #tpu.memory_space<vmem>>, vector<1x16x8xbf16>
    %1 = vector.shape_cast %0 : vector<1x16x8xbf16> to vector<16x8xbf16>
    %2 = arith.extf %1 : vector<16x8xbf16> to vector<16x8xf32>
    %c0_2 = arith.constant 0 : index
    %c0_3 = arith.constant 0 : index
    %c0_4 = arith.constant 0 : index
    %3 = vector.load %arg3[%c0_2, %c0_3, %c0_4] : memref<1x8x8xbf16, #tpu.memory_space<vmem>>, vector<1x8x8xbf16>
    %4 = vector.shape_cast %3 : vector<1x8x8xbf16> to vector<8x8xbf16>
    %5 = arith.extf %4 : vector<8x8xbf16> to vector<8x8xf32>
    %6 = tpu.concatenate %2, %5 in 0 : vector<16x8xf32>, vector<8x8xf32> -> vector<24x8xf32>
    %7 = vector.extract_strided_slice %6 {offsets = [0, 0], sizes = [16, 8], strides = [1, 1]} : vector<24x8xf32> to vector<16x8xf32>
    %8 = arith.truncf %7 : vector<16x8xf32> to vector<16x8xbf16>
    %c0_5 = arith.constant 0 : index
    %c0_6 = arith.constant 0 : index
    %c0_7 = arith.constant 0 : index
    %9 = vector.load %arg4[%c0_5, %c0_6, %c0_7] : memref<2x8x256xbf16, #tpu.memory_space<vmem>>, vector<1x8x256xbf16>
    %10 = vector.shape_cast %9 : vector<1x8x256xbf16> to vector<8x256xbf16>
    %cst = arith.constant dense<0.000000e+00> : vector<16x256xf32>
    %11 = tpu.matmul %8, %10, %cst {dimension_numbers = #tpu.dot_dimension_numbers<[1], [0], [0], [1], [0, 0, 1, 1], [], []>} : vector<16x8xbf16>, vector<8x256xbf16>, vector<16x256xf32> -> vector<16x256xf32>
    %12 = vector.extract_strided_slice %6 {offsets = [1, 0], sizes = [16, 8], strides = [1, 1]} : vector<24x8xf32> to vector<16x8xf32>
    %13 = arith.truncf %12 : vector<16x8xf32> to vector<16x8xbf16>
    %c1 = arith.constant 1 : index
    %c0_8 = arith.constant 0 : index
    %c0_9 = arith.constant 0 : index
    %14 = vector.load %arg4[%c1, %c0_8, %c0_9] : memref<2x8x256xbf16, #tpu.memory_space<vmem>>, vector<1x8x256xbf16>
    %15 = vector.shape_cast %14 : vector<1x8x256xbf16> to vector<8x256xbf16>
    %cst_10 = arith.constant dense<0.000000e+00> : vector<16x256xf32>
    %16 = tpu.matmul %13, %15, %cst_10 {dimension_numbers = #tpu.dot_dimension_numbers<[1], [0], [0], [1], [0, 0, 1, 1], [], []>} : vector<16x8xbf16>, vector<8x256xbf16>, vector<16x256xf32> -> vector<16x256xf32>
    %17 = arith.addf %11, %16 : vector<16x256xf32>
    %18 = vector.extract_strided_slice %17 {offsets = [0, 0], sizes = [16, 128], strides = [1, 1]} : vector<16x256xf32> to vector<16x128xf32>
    %19 = vector.extract_strided_slice %17 {offsets = [0, 128], sizes = [16, 128], strides = [1, 1]} : vector<16x256xf32> to vector<16x128xf32>
    %20 = arith.mulf %18, %18 : vector<16x128xf32>
    %21 = arith.mulf %19, %19 : vector<16x128xf32>
    %22 = arith.addf %20, %21 : vector<16x128xf32>
    %23 = tpu.transpose %22, [1, 0] : vector<16x128xf32> -> vector<128x16xf32>
    %c0_11 = arith.constant 0 : index
    %c0_12 = arith.constant 0 : index
    %c0_13 = arith.constant 0 : index
    %24 = vector.load %arg5[%c0_11, %c0_12, %c0_13] : memref<1x128x16xf32, #tpu.memory_space<vmem>>, vector<1x128x16xf32>
    %25 = vector.shape_cast %24 : vector<1x128x16xf32> to vector<128x16xf32>
    %26 = vector.shape_cast %23 : vector<128x16xf32> to vector<1x128x16xf32>
    tpu.vector_store %arg5[%c0_11, %c0_12, %c0_13], %26 {strides = array<i32>} : memref<1x128x16xf32, #tpu.memory_space<vmem>>, vector<1x128x16xf32>,
    return
  }
  func.func @transform_0(%arg0: i32, %arg1: i32) -> (i32, i32, i32) {
    %c0_i32 = arith.constant 0 : i32
    %c0_i32_0 = arith.constant 0 : i32
    return %arg0, %arg1, %c0_i32 : i32, i32, i32
  }
  func.func @transform_1(%arg0: i32, %arg1: i32) -> (i32, i32, i32) {
    %c1_i32 = arith.constant 1 : i32
    %0 = arith.addi %arg1, %c1_i32 : i32
    %c2_i32 = arith.constant 2 : i32
    %1 = arith.muli %0, %c2_i32 : i32
    %c0_i32 = arith.constant 0 : i32
    %c0_i32_0 = arith.constant 0 : i32
    return %arg0, %1, %c0_i32 : i32, i32, i32
  }
  func.func @transform_2(%arg0: i32, %arg1: i32) -> (i32, i32, i32) {
    %c0_i32 = arith.constant 0 : i32
    %c0_i32_0 = arith.constant 0 : i32
    %c0_i32_1 = arith.constant 0 : i32
    %c0_i32_2 = arith.constant 0 : i32
    return %c0_i32, %c0_i32_0, %c0_i32_1 : i32, i32, i32
  }
  func.func @transform_3(%arg0: i32, %arg1: i32) -> (i32, i32, i32) {
    %c0_i32 = arith.constant 0 : i32
    %c0_i32_0 = arith.constant 0 : i32
    return %arg0, %c0_i32, %arg1 : i32, i32, i32
  }
}

</mosaic_0001>

<llo_original>
// kernel: tpu_custom_call.1
$region0: #{tpu_custom_call.1}
  #allocation0 [shape = 'u32[]', space=smem, size = 0x4, offset = 0x4, fixed_abs, tag = 'smem constant byte address 0x4 - core index']
  #allocation1 [shape = 'u32[144,128]{1,0:T(1,128)}', space=vmem, size = 0x12000, scoped, tag = 'internal scratch']
  %s0 = inlined_call_operand.vmem [shape: bf16[2,24,8], index: 0, kind: input, shape index: {}]
  %s1 = inlined_call_operand.vmem [shape: bf16[2,24,8], index: 1, kind: input, shape index: {}]
  %s2 = inlined_call_operand.vmem [shape: bf16[2,8,256], index: 2, kind: input, shape index: {}]
  %s3 = inlined_call_operand.vmem [shape: f32[2,128,16], index: 3, kind: output, shape index: {}]
  %s4 = sld [smem:[#allocation0]]
  $region45: #{tpu_custom_call.1} parent=0
    _
  %s6 = ssub.s32 1, %s4
  %s7 = scalar_select 0, %s6, %s4
  loop: start=0, step=1, limit=4
  $region2: #{tpu_custom_call.1} parent=0 // loop_pre_header
    _
  $region3: #{tpu_custom_call.1} parent=0 // loop_header
    %s9 = sphi 0, %s13
    %p10 = scmp.ge.s32.totalorder %s9, 4
    %s16 = sphi 0, %s28
    %s17 = sphi 0, %s24
    %s18 = sphi 0, %s16
    %s19 = sphi 0, %s17
    %s20 = sphi 0, %s18
    %s21 = sphi 0, %s19
    %s33 = sphi 0, %s35
    %s36 = sphi 0, %s33
    %s37 = sphi 0, %s36
    %s53 = sphi 0, %s37
    %s65 = sphi 0, %s67
    %s68 = sphi 0, %s65
    %s69 = sphi 0, %s68
    %s85 = sphi 0, %s69
    %s89 = sphi 0, %s89
    %s91 = sphi 0, %s89
    %s92 = sphi 0, %s91
    %s106 = sphi 0, %s92
    %s114 = sphi 0, %s116
    %s117 = sphi 0, %s114
    %s118 = sphi 0, %s117
    %s134 = sphi 0, %s118
  $region4: #{tpu_custom_call.1} parent=0 // loop_header_branch
    %12 = sbr.rel (%p10) target = $region8
  $region5: #{tpu_custom_call.1} parent=0 // loop_body
    %s14 = ssub.s32 %s9, 1
    %s15 = ssub.s32 %s9, 2
    %s22 = sadd.s32 1, %s17
    %p23 = scmp.ge.s32.totalorder %s22, 1
    %s24 = scalar_select %p23, 0, %s22
    %s25 = sadd.s32 1, %s16
    %s26 = scalar_select %p23, %s25, %s16
    %p27 = scmp.ge.s32.totalorder %s26, 2
    %s28 = scalar_select %p27, 0, %s26
    %s29 = ssub.s32 %s16, %s28
    %s30 = ssub.s32 %s17, %s24
    %s31 = sor.u32 %s29, %s30
    %p32 = scmp.eq.s32.totalorder %s31, 0
    %s34 = sadd.s32 %s33, 1
    %s35 = scalar_select %p32, %s33, %s34
    %p38 = pneg %p32
    %p39 = scmp.eq.s32.totalorder %s9, 1
    %p40 = por %p38, %p39
    %p41 = scmp.ne.s32.totalorder %s33, %s36
    %p42 = scmp.eq.s32.totalorder %s9, 0
    %p43 = por %p41, %p42
    %p44 = scmp.ne.s32.totalorder %s33, %s36
    %p45 = scmp.eq.s32.totalorder %s14, 1
    %p46 = por %p44, %p45
    %p47 = scmp.ne.s32.totalorder %s36, %s37
    %p48 = scmp.eq.s32.totalorder %s14, 0
    %p49 = por %p47, %p48
    %p50 = scmp.ne.s32.totalorder %s36, %s37
    %p51 = scmp.eq.s32.totalorder %s15, 1
    %p52 = por %p50, %p51
    %p54 = scmp.ne.s32.totalorder %s37, %s53
    %p55 = scmp.eq.s32.totalorder %s15, 0
    %p56 = por %p54, %p55
    %s57 = sadd.s32 %s17, 1
    %s58 = smul.u32 %s57, 2
    %s59 = sadd.s32 %s24, 1
    %s60 = smul.u32 %s59, 2
    %s61 = ssub.s32 %s16, %s28
    %s62 = ssub.s32 %s58, %s60
    %s63 = sor.u32 %s61, %s62
    %p64 = scmp.eq.s32.totalorder %s63, 0
    %s66 = sadd.s32 %s65, 1
    %s67 = scalar_select %p64, %s65, %s66
    %p70 = pneg %p64
    %p71 = scmp.eq.s32.totalorder %s9, 1
    %p72 = por %p70, %p71
    %p73 = scmp.ne.s32.totalorder %s65, %s68
    %p74 = scmp.eq.s32.totalorder %s9, 0
    %p75 = por %p73, %p74
    %p76 = scmp.ne.s32.totalorder %s65, %s68
    %p77 = scmp.eq.s32.totalorder %s14, 1
    %p78 = por %p76, %p77
    %p79 = scmp.ne.s32.totalorder %s68, %s69
    %p80 = scmp.eq.s32.totalorder %s14, 0
    %p81 = por %p79, %p80
    %p82 = scmp.ne.s32.totalorder %s68, %s69
    %p83 = scmp.eq.s32.totalorder %s15, 1
    %p84 = por %p82, %p83
    %p86 = scmp.ne.s32.totalorder %s69, %s85
    %p87 = scmp.eq.s32.totalorder %s15, 0
    %p88 = por %p86, %p87
    %s90 = sadd.s32 %s89, 1
    %p93 = scmp.eq.s32.totalorder %s9, 1
    %p94 = scmp.ne.s32.totalorder %s89, %s91
    %p95 = scmp.eq.s32.totalorder %s9, 0
    %p96 = por %p94, %p95
    %p97 = scmp.ne.s32.totalorder %s89, %s91
    %p98 = scmp.eq.s32.totalorder %s14, 1
    %p99 = por %p97, %p98
    %p100 = scmp.ne.s32.totalorder %s91, %s92
    %p101 = scmp.eq.s32.totalorder %s14, 0
    %p102 = por %p100, %p101
    %p103 = scmp.ne.s32.totalorder %s91, %s92
    %p104 = scmp.eq.s32.totalorder %s15, 1
    %p105 = por %p103, %p104
    %p107 = scmp.ne.s32.totalorder %s92, %s106
    %p108 = scmp.eq.s32.totalorder %s15, 0
    %p109 = por %p107, %p108
    %s110 = ssub.s32 %s16, %s28
    %s111 = ssub.s32 %s17, %s24
    %s112 = sor.u32 %s110, %s111
    %p113 = scmp.eq.s32.totalorder %s112, 0
    %s115 = sadd.s32 %s114, 1
    %s116 = scalar_select %p113, %s114, %s115
    %p119 = pneg %p113
    %p120 = scmp.eq.s32.totalorder %s9, 1
    %p121 = por %p119, %p120
    %p122 = scmp.ne.s32.totalorder %s114, %s117
    %p123 = scmp.eq.s32.totalorder %s9, 0
    %p124 = por %p122, %p123
    %p125 = scmp.ne.s32.totalorder %s114, %s117
    %p126 = scmp.eq.s32.totalorder %s14, 1
    %p127 = por %p125, %p126
    %p128 = scmp.ne.s32.totalorder %s117, %s118
    %p129 = scmp.eq.s32.totalorder %s14, 0
    %p130 = por %p128, %p129
    %p131 = scmp.ne.s32.totalorder %s117, %s118
    %p132 = scmp.eq.s32.totalorder %s15, 1
    %p133 = por %p131, %p132
    %p135 = scmp.ne.s32.totalorder %s118, %s134
    %p136 = scmp.eq.s32.totalorder %s15, 0
    %p137 = por %p135, %p136
    %p138 = scmp.le.s32.totalorder 1, %s9
    %p139 = scmp.lt.s32.totalorder %s9, 3
    %p140 = pnand %p138, %p139
    %p141 = pneg %p140
    // Predicated region
    $region9: #{tpu_custom_call.1} parent=5 // pred_check
      _
    $region10: #{tpu_custom_call.1} parent=5 // pred_check_branch
      %143 = sbr.rel (%p140) target = $region12
    $region11: #{tpu_custom_call.1} parent=5 // pred_region
      %s144 = ssub.s32 %s9, 1
      // Predicated region
      $region13: #{tpu_custom_call.1} parent=11 // pred_check
        %p145 = pneg %p102
      $region14: #{tpu_custom_call.1} parent=11 // pred_check_branch
        %147 = sbr.rel (%p145) target = $region16
      $region15: #{tpu_custom_call.1} parent=11 // pred_region
        _
      $region16: #{tpu_custom_call.1} parent=11 // pred_fallthru
        _
    $region12: #{tpu_custom_call.1} parent=5 // pred_fallthru
      _
    %p148 = scmp.lt.s32.totalorder %s9, 2
    // Predicated region
    $region17: #{tpu_custom_call.1} parent=5 // pred_check
      %p149 = pneg %p148
    $region18: #{tpu_custom_call.1} parent=5 // pred_check_branch
      %151 = sbr.rel (%p149) target = $region20
    $region19: #{tpu_custom_call.1} parent=5 // pred_region
      // Predicated region
      $region21: #{tpu_custom_call.1} parent=19 // pred_check
        %p152 = pneg %p43
      $region22: #{tpu_custom_call.1} parent=19 // pred_check_branch
        %154 = sbr.rel (%p152) target = $region24
      $region23: #{tpu_custom_call.1} parent=19 // pred_region
        %s155 = smul.u32 2, %s17
        %s156 = ssub.s32 3, %s155
        %p157 = scmp.lt.s32.totalorder %s156, 2
        %s158 = scalar_select %p157, %s156, 2
        %s159 = smul.u32 64, %s158
        %p160 = scmp.lt.s32.totalorder %s16, 1
        %s161 = scalar_select %p160, %s16, 1
        %p162 = scmp.lt.s32.totalorder %s155, 2
        %s163 = scalar_select %p162, %s155, 2
        %s164 = smul.addr %s161, 3
        %s165 = sadd.s32 %s163, %s164
        %s166 = smul.addr %s165, 4
        %s167 = scalar_lea.vmem %s0, %s166
        %s168 = smul.u32 2, %s17
        %s169 = ssub.s32 3, %s168
        %p170 = scmp.lt.s32.totalorder %s169, 2
        %s171 = scalar_select %p170, %s169, 2
        %s172 = smul.u32 64, %s171
      $region24: #{tpu_custom_call.1} parent=19 // pred_fallthru
        _
      // Predicated region
      $region25: #{tpu_custom_call.1} parent=19 // pred_check
        %p173 = pneg %p75
      $region26: #{tpu_custom_call.1} parent=19 // pred_check_branch
        %175 = sbr.rel (%p173) target = $region28
      $region27: #{tpu_custom_call.1} parent=19 // pred_region
        %s176 = sadd.s32 %s17, 1
        %s177 = smul.u32 %s176, 2
        %p178 = scmp.lt.s32.totalorder %s16, 1
        %s179 = scalar_select %p178, %s16, 1
        %p180 = scmp.lt.s32.totalorder %s177, 2
        %s181 = scalar_select %p180, %s177, 2
        %s182 = smul.addr %s179, 3
        %s183 = sadd.s32 %s181, %s182
        %s184 = smul.addr %s183, 4
        %s185 = scalar_lea.vmem %s1, %s184
        %s186 = sadd.s32 %s17, 1
        %s187 = smul.u32 %s186, 2
      $region28: #{tpu_custom_call.1} parent=19 // pred_fallthru
        _
    $region20: #{tpu_custom_call.1} parent=5 // pred_fallthru
      _
    %p188 = scmp.le.s32.totalorder 1, %s9
    %p189 = scmp.lt.s32.totalorder %s9, 3
    %p190 = pnand %p188, %p189
    %p191 = pneg %p190
    // Predicated region
    $region29: #{tpu_custom_call.1} parent=5 // pred_check
      _
    $region30: #{tpu_custom_call.1} parent=5 // pred_check_branch
      %193 = sbr.rel (%p190) target = $region32
    $region31: #{tpu_custom_call.1} parent=5 // pred_region
      %s194 = ssub.s32 %s9, 1
      %s195 = smul.u32 2, %s19
      %s196 = ssub.s32 3, %s195
      %p197 = scmp.lt.s32.totalorder %s196, 2
      %s198 = scalar_select %p197, %s196, 2
      %s199 = smul.u32 64, %s198
      %p200 = scmp.lt.s32.totalorder %s18, 1
      %s201 = scalar_select %p200, %s18, 1
      %p202 = scmp.lt.s32.totalorder %s195, 2
      %s203 = scalar_select %p202, %s195, 2
      %s204 = smul.addr %s201, 3
      %s205 = sadd.s32 %s203, %s204
      %s206 = smul.addr %s205, 4
      %s207 = scalar_lea.vmem %s0, %s206
      %p208 = pneg %p49
      %p209 = pneg %p46
      %s210 = sadd.s32 %s19, 1
      %s211 = smul.u32 %s210, 2
      %p212 = scmp.lt.s32.totalorder %s18, 1
      %s213 = scalar_select %p212, %s18, 1
      %p214 = scmp.lt.s32.totalorder %s211, 2
      %s215 = scalar_select %p214, %s211, 2
      %s216 = smul.addr %s213, 3
      %s217 = sadd.s32 %s215, %s216
      %s218 = smul.addr %s217, 4
      %s219 = scalar_lea.vmem %s1, %s218
      %p220 = pneg %p81
      %p221 = pneg %p78
      %p222 = pneg %p102
      %p223 = pneg %p99
      %p224 = pneg %p130
      %p225 = pneg %p127
      %p226 = scmp.lt.s32.totalorder %s18, 1
      %s227 = scalar_select %p226, %s18, 1
      %p228 = scmp.lt.s32.totalorder %s19, 0
      %s229 = scalar_select %p228, %s19, 0
      %s230 = smul.addr %s227, 16
      %s231 = sadd.s32 %s229, %s230
      %s232 = smul.addr %s231, 8
      %s233 = scalar_lea.vmem %s3, %s232
      %s234 = smul.u32 2, %s19
      %s235 = ssub.s32 3, %s234
      %p236 = scmp.lt.s32.totalorder %s235, 2
      %s237 = scalar_select %p236, %s235, 2
      %s238 = smul.u32 64, %s237
      %p239 = scmp.lt.s32.totalorder %s18, 1
      %s240 = scalar_select %p239, %s18, 1
      %p241 = scmp.lt.s32.totalorder %s234, 2
      %s242 = scalar_select %p241, %s234, 2
      %s243 = smul.addr %s240, 3
      %s244 = sadd.s32 %s242, %s243
      %s245 = smul.addr %s244, 4
      %s246 = scalar_lea.vmem %s0, %s245
      %s247 = smul.u32 2, %s19
      %s248 = ssub.s32 3, %s247
      %p249 = scmp.lt.s32.totalorder %s248, 2
      %s250 = scalar_select %p249, %s248, 2
      %s251 = smul.u32 64, %s250
      %s252 = sadd.s32 %s19, 1
      %s253 = smul.u32 %s252, 2
      %p254 = scmp.lt.s32.totalorder %s18, 1
      %s255 = scalar_select %p254, %s18, 1
      %p256 = scmp.lt.s32.totalorder %s253, 2
      %s257 = scalar_select %p256, %s253, 2
      %s258 = smul.addr %s255, 3
      %s259 = sadd.s32 %s257, %s258
      %s260 = smul.addr %s259, 4
      %s261 = scalar_lea.vmem %s1, %s260
      %s262 = sadd.s32 %s19, 1
      %s263 = smul.u32 %s262, 2
      %p264 = scmp.lt.s32.totalorder %s18, 1
      %s265 = scalar_select %p264, %s18, 1
      %p266 = scmp.lt.s32.totalorder %s19, 0
      %s267 = scalar_select %p266, %s19, 0
      %s268 = smul.addr %s265, 16
      %s269 = sadd.s32 %s267, %s268
      %s270 = smul.addr %s269, 8
      %s271 = scalar_lea.vmem %s3, %s270
      %v273 = vld [vmem:[%s246] sm:$0xf]
      %v274 = vld [vmem:[%s246 + $0x4] sm:$0xf]
      %v275 = vunpack.c.l.bf16 %v273
      %v276 = vunpack.c.l.bf16 %v274
      %v277 = vld [vmem:[%s261] sm:$0xf]
      %v278 = vunpack.c.l.bf16 %v277
      %v279 = vpack.c.bf16 %v276, %v275
      %v280 = vld [vmem:[%s2] sm:$0xff]
      %v281 = vpack.c.bf16 %v278, %v278
      %s282 = scalar_lea.vmem %s2, 8
      %v283 = vld [vmem:[%s282] sm:$0xff]
      %vm284 = vsmask.f32 7424
      %v286 = vshrl.u32 %v279, 16
      %v288 = vshll.u32 %v279, 16
      %v290 = vrot.slane %v288, 1
      %v291 = vor.u32 %v286, %v290
      %v293 = vshll.u32 %v281, 16
      %v295 = vrot.slane %v293, 1
      %v296 = vsel %vm284, %v291, %v295
      %v298 = vunpack.c.l.b16 %v283
      %v299 = vunpack.c.h.b16 %v283
      %v300 = vpack.c.b16 %v298, %v298
      %v301 = vpack.c.b16 %v299, %v299
      %vm302 = vcmask 64512
      %v304 = vsel %vm302, %v296, 0
      %vm306 = vcmask 1043456
      %v308 = vsel %vm306, %v300, 0
      %v311 = vsel %vm306, %v301, 0
      %313 = vmatprep.subr.bf16.mxu0 %v311
      %314 = vmatpush1.bf16.msra.mxu0 %v308
      %315 = vmatprep.subr.bf16.mxu0 0
      %316 = vmatpush1.bf16.msra.mxu0 0
      %317 = vmatprep.subr.bf16.mxu0 0
      %318 = vmatpush1.bf16.msra.mxu0 0
      %319 = vmatprep.subr.bf16.mxu0 0
      %320 = vmatpush1.bf16.msra.mxu0 0
      %321 = vmatprep.subr.bf16.mxu0 0
      %322 = vmatpush1.bf16.msra.mxu0 0
      %323 = vmatprep.subr.bf16.mxu0 0
      %324 = vmatpush1.bf16.msra.mxu0 0
      %325 = vmatprep.subr.bf16.mxu0 0
      %326 = vmatpush1.bf16.msra.mxu0 0
      %327 = vmatprep.subr.bf16.mxu0 0
      %328 = vmatpush1.bf16.msra.mxu0 0
      %329 = vmatprep.subr.bf16.mxu0 0
      %330 = vmatpush1.bf16.msra.mxu0 0
      %331 = vmatprep.subr.bf16.mxu0 0
      %332 = vmatpush1.bf16.msra.mxu0 0
      %333 = vmatprep.subr.bf16.mxu0 0
      %334 = vmatpush1.bf16.msra.mxu0 0
      %335 = vmatprep.subr.bf16.mxu0 0
      %336 = vmatpush1.bf16.msra.mxu0 0
      %337 = vmatprep.subr.bf16.mxu0 0
      %338 = vmatpush1.bf16.msra.mxu0 0
      %339 = vmatprep.subr.bf16.mxu0 0
      %340 = vmatpush1.bf16.msra.mxu0 0
      %341 = vmatprep.subr.bf16.mxu0 0
      %342 = vmatpush1.bf16.msra.mxu0 0
      %343 = vmatprep.subr.bf16.mxu0 0
      %344 = vmatpush1.bf16.msra.mxu0 0
      %345 = vmatprep.mubr.bf16.mxu0 0
      %346 = vmatmul.mubr.bf16.gmra.mrb[0].mxu0 %v304
      %v347 = vpop.f32.mrb[0].mxu0
      %v348 = vadd.f32 0.0, %v347
      %v349 = vpop.f32.mrb[0].mxu0
      %v350 = vadd.f32 0.0, %v349
      %v351 = vpop.f32.mrb[0].mxu0
      %v352 = vadd.f32 0.0, %v351
      %v353 = vpop.f32.mrb[0].mxu0
      %v354 = vadd.f32 0.0, %v353
      %355 = vdwg.mxu0
      %v357 = vunpack.c.l.b16 %v280
      %v358 = vunpack.c.h.b16 %v280
      %v359 = vpack.c.b16 %v357, %v357
      %v360 = vpack.c.b16 %v358, %v358
      %v361 = vsel %vm302, %v279, 0
      %v364 = vsel %vm306, %v359, 0
      %v367 = vsel %vm306, %v360, 0
      %369 = vmatprep.subr.bf16.mxu0 %v367
      %370 = vmatpush1.bf16.msra.mxu0 %v364
      %371 = vmatprep.subr.bf16.mxu0 0
      %372 = vmatpush1.bf16.msra.mxu0 0
      %373 = vmatprep.subr.bf16.mxu0 0
      %374 = vmatpush1.bf16.msra.mxu0 0
      %375 = vmatprep.subr.bf16.mxu0 0
      %376 = vmatpush1.bf16.msra.mxu0 0
      %377 = vmatprep.subr.bf16.mxu0 0
      %378 = vmatpush1.bf16.msra.mxu0 0
      %379 = vmatprep.subr.bf16.mxu0 0
      %380 = vmatpush1.bf16.msra.mxu0 0
      %381 = vmatprep.subr.bf16.mxu0 0
      %382 = vmatpush1.bf16.msra.mxu0 0
      %383 = vmatprep.subr.bf16.mxu0 0
      %384 = vmatpush1.bf16.msra.mxu0 0
      %385 = vmatprep.subr.bf16.mxu0 0
      %386 = vmatpush1.bf16.msra.mxu0 0
      %387 = vmatprep.subr.bf16.mxu0 0
      %388 = vmatpush1.bf16.msra.mxu0 0
      %389 = vmatprep.subr.bf16.mxu0 0
      %390 = vmatpush1.bf16.msra.mxu0 0
      %391 = vmatprep.subr.bf16.mxu0 0
      %392 = vmatpush1.bf16.msra.mxu0 0
      %393 = vmatprep.subr.bf16.mxu0 0
      %394 = vmatpush1.bf16.msra.mxu0 0
      %395 = vmatprep.subr.bf16.mxu0 0
      %396 = vmatpush1.bf16.msra.mxu0 0
      %397 = vmatprep.subr.bf16.mxu0 0
      %398 = vmatpush1.bf16.msra.mxu0 0
      %399 = vmatprep.subr.bf16.mxu0 0
      %400 = vmatpush1.bf16.msra.mxu0 0
      %401 = vmatprep.mubr.bf16.mxu0 0
      %402 = vmatmul.mubr.bf16.gmra.mrb[0].mxu0 %v361
      %v403 = vpop.f32.mrb[0].mxu0
      %v404 = vadd.f32 %v348, %v403
      %v405 = vpop.f32.mrb[0].mxu0
      %v406 = vadd.f32 %v350, %v405
      %v407 = vpop.f32.mrb[0].mxu0
      %v408 = vadd.f32 %v352, %v407
      %v409 = vpop.f32.mrb[0].mxu0
      %v410 = vadd.f32 %v354, %v409
      %411 = vdwg.mxu0
      %v412 = vmul.f32 %v404, %v404
      %v413 = vmul.f32 %v408, %v408
      %v414 = vmul.f32 %v406, %v406
      %v415 = vmul.f32 %v410, %v410
      %v416 = vadd.f32 %v412, %v414
      %v417 = vadd.f32 %v413, %v415
      %418 = vxpose.xlu0.b32.start [1/16] %v416, 128
      %419 = vxpose.xlu0.b32.cont [2/16] %v417, 128
      %420 = vxpose.xlu0.b32.cont [3/16] 0.0, 128
      %421 = vxpose.xlu0.b32.cont [4/16] 0.0, 128
      %422 = vxpose.xlu0.b32.cont [5/16] 0.0, 128
      %423 = vxpose.xlu0.b32.cont [6/16] 0.0, 128
      %424 = vxpose.xlu0.b32.cont [7/16] 0.0, 128
      %425 = vxpose.xlu0.b32.cont [8/16] 0.0, 128
      %426 = vxpose.xlu0.b32.cont [9/16] 0.0, 128
      %427 = vxpose.xlu0.b32.cont [10/16] 0.0, 128
      %428 = vxpose.xlu0.b32.cont [11/16] 0.0, 128
      %429 = vxpose.xlu0.b32.cont [12/16] 0.0, 128
      %430 = vxpose.xlu0.b32.cont [13/16] 0.0, 128
      %431 = vxpose.xlu0.b32.cont [14/16] 0.0, 128
      %432 = vxpose.xlu0.b32.cont [15/16] 0.0, 128
      %433 = vxpose.xlu0.b32.end [16/16] 0.0, 128
      %v434 = vpop.trf.xlu0
      %v435 = vpop.trf.xlu0
      %v436 = vpop.trf.xlu0
      %v437 = vpop.trf.xlu0
      %v438 = vpop.trf.xlu0
      %v439 = vpop.trf.xlu0
      %v440 = vpop.trf.xlu0
      %v441 = vpop.trf.xlu0
      %v442 = vpop.trf.xlu0
      %v443 = vpop.trf.xlu0
      %v444 = vpop.trf.xlu0
      %v445 = vpop.trf.xlu0
      %v446 = vpop.trf.xlu0
      %v447 = vpop.trf.xlu0
      %v448 = vpop.trf.xlu0
      %v449 = vpop.trf.xlu0
      %vm450 = vcmask 130048
      %451 = vst.msk [vmem:[%s271] sm:$0xff] %vm450, %v434
      %452 = vst.msk [vmem:[%s271 + $0x8] sm:$0xff] %vm450, %v435
      %453 = vst.msk [vmem:[%s271 + $0x10] sm:$0xff] %vm450, %v436
      %454 = vst.msk [vmem:[%s271 + $0x18] sm:$0xff] %vm450, %v437
      %455 = vst.msk [vmem:[%s271 + $0x20] sm:$0xff] %vm450, %v438
      %456 = vst.msk [vmem:[%s271 + $0x28] sm:$0xff] %vm450, %v439
      %457 = vst.msk [vmem:[%s271 + $0x30] sm:$0xff] %vm450, %v440
      %458 = vst.msk [vmem:[%s271 + $0x38] sm:$0xff] %vm450, %v441
      %459 = vst.msk [vmem:[%s271 + $0x40] sm:$0xff] %vm450, %v442
      %460 = vst.msk [vmem:[%s271 + $0x48] sm:$0xff] %vm450, %v443
      %461 = vst.msk [vmem:[%s271 + $0x50] sm:$0xff] %vm450, %v444
      %462 = vst.msk [vmem:[%s271 + $0x58] sm:$0xff] %vm450, %v445
      %463 = vst.msk [vmem:[%s271 + $0x60] sm:$0xff] %vm450, %v446
      %464 = vst.msk [vmem:[%s271 + $0x68] sm:$0xff] %vm450, %v447
      %465 = vst.msk [vmem:[%s271 + $0x70] sm:$0xff] %vm450, %v448
      %466 = vst.msk [vmem:[%s271 + $0x78] sm:$0xff] %vm450, %v449
      %p467 = scmp.lt.s32.totalorder %s18, 1
      %s468 = scalar_select %p467, %s18, 1
      %p469 = scmp.lt.s32.totalorder %s19, 0
      %s470 = scalar_select %p469, %s19, 0
      %s471 = smul.addr %s468, 16
      %s472 = sadd.s32 %s470, %s471
      %s473 = smul.addr %s472, 8
      %s474 = scalar_lea.vmem %s3, %s473
      // Predicated region
      $region33: #{tpu_custom_call.1} parent=31 // pred_check
        %p475 = pneg %p127
      $region34: #{tpu_custom_call.1} parent=31 // pred_check_branch
        %477 = sbr.rel (%p475) target = $region36
      $region35: #{tpu_custom_call.1} parent=31 // pred_region
        _
      $region36: #{tpu_custom_call.1} parent=31 // pred_fallthru
        _
    $region32: #{tpu_custom_call.1} parent=5 // pred_fallthru
      _
    %p478 = scmp.le.s32.totalorder 2, %s9
    // Predicated region
    $region37: #{tpu_custom_call.1} parent=5 // pred_check
      %p479 = pneg %p478
    $region38: #{tpu_custom_call.1} parent=5 // pred_check_branch
      %481 = sbr.rel (%p479) target = $region40
    $region39: #{tpu_custom_call.1} parent=5 // pred_region
      %s482 = ssub.s32 %s9, 2
      // Predicated region
      $region41: #{tpu_custom_call.1} parent=39 // pred_check
        %p483 = pneg %p133
      $region42: #{tpu_custom_call.1} parent=39 // pred_check_branch
        %485 = sbr.rel (%p483) target = $region44
      $region43: #{tpu_custom_call.1} parent=39 // pred_region
        %p486 = scmp.lt.s32.totalorder %s20, 1
        %s487 = scalar_select %p486, %s20, 1
        %p488 = scmp.lt.s32.totalorder %s21, 0
        %s489 = scalar_select %p488, %s21, 0
        %s490 = smul.addr %s487, 16
        %s491 = sadd.s32 %s489, %s490
        %s492 = smul.addr %s491, 8
        %s493 = scalar_lea.vmem %s3, %s492
      $region44: #{tpu_custom_call.1} parent=39 // pred_fallthru
        _
    $region40: #{tpu_custom_call.1} parent=5 // pred_fallthru
      _
  $region6: #{tpu_custom_call.1} parent=0 // loop_footer
    %s13 = sadd.s32 1, %s9
  $region7: #{tpu_custom_call.1} parent=0 // loop_footer_branch
    %8 = sbr.rel target = $region3
  $region8: #{tpu_custom_call.1} parent=0 // loop_exit
    _

</llo_original>
